<compile_context>
chip_gen: v6e
topology: v6e:2x2x1
jax: 0.10.0
libtpu: 0.0.40
codegen_flags: <defaults>
</compile_context>

<pallas_src>
import jax
import jax.numpy as jnp
from jax import lax
from jax.experimental import pallas as pl
from jax.experimental.pallas import tpu as pltpu

IGNORE_INDEX = 255
_TARGET_STEP_BYTES = 2 * 1024 * 1024    # aim for ~2 MiB of x per grid step
_VMEM_CAP_BYTES = 40 * 1024 * 1024      # keep double-buffers well under v7x 64 MiB


def _round_up(v, m):
    return ((v + m - 1) // m) * m


def cross_entropy_loss_2d(inputs, targets):
    """inputs: (N, C, H, W) probabilities; targets: (N, H, W) int class ids."""
    N, C, H, W = inputs.shape
    HW = H * W
    itemsize = inputs.dtype.itemsize

    # ---- lane-tile sizing (lane axis = pixels) ---------------------------
    hw128 = _round_up(HW, 128)                              # lane-aligned spatial extent
    tl_budget = max(128, (_TARGET_STEP_BYTES // max(C * itemsize, 1)) // 128 * 128)
    tl_min_row = max(128, _round_up(-(-2048 // itemsize), 128))  # >= 2 KB per DMA row
    TL = min(hw128, max(tl_budget, tl_min_row))
    # huge-C safety: keep a double-buffered x block comfortably inside VMEM
    while TL > 128 and 2 * C * TL * itemsize > _VMEM_CAP_BYTES // 2:
        TL = max(128, ((TL // 2) // 128) * 128)
    num_tiles = pl.cdiv(HW, TL)

    # ---- batch blocking: pack images per step until ~2 MiB of x / step ---
    x_block_bytes = C * TL * itemsize
    BN = int(min(N, max(1, _TARGET_STEP_BYTES // x_block_bytes)))
    grid_n = pl.cdiv(N, BN)

    # ---- inputs stay in native NCHW layout: no transpose, no pad ---------
    x = inputs.reshape(N, C, HW)
    t = targets.reshape(N, 1, HW)
    if t.dtype != jnp.int32:
        t = t.astype(jnp.int32)

    def kernel(x_ref, t_ref, out_ref):
        nb = pl.program_id(0)
        tile = pl.program_id(1)

        xv = x_ref[...]                                    # (BN, C, TL) probabilities
        tv = t_ref[...]                                    # (BN, 1, TL) int32 targets

        # One-hot select of p[target] per pixel (no gather), then ONE log/pixel.
        cls_ids = lax.broadcasted_iota(jnp.int32, xv.shape, dimension=1)
        onehot = cls_ids == tv                             # (BN, C, TL)
        picked = jnp.sum(jnp.where(onehot, xv, jnp.zeros_like(xv)), axis=1)  # (BN, TL)
        logp = jnp.log(picked.astype(jnp.float32))         # (BN, TL)

        t2 = tv[:, 0, :]                                   # (BN, TL)
        lane = tile * TL + lax.broadcasted_iota(jnp.int32, t2.shape, 1)
        row = nb * BN + lax.broadcasted_iota(jnp.int32, t2.shape, 0)
        # Ragged spatial / batch tails read undefined data; mask them here.
        # jnp.where is a true select on TPU, so garbage/-inf/NaN never leaks.
        valid = (t2 != IGNORE_INDEX) & (lane < HW) & (row < N)

        loss = jnp.where(valid, -logp, jnp.float32(0.0))   # (BN, TL)
        out_ref[...] = jnp.concatenate(
            [jnp.sum(loss, axis=0, keepdims=True),
             jnp.sum(valid.astype(jnp.float32), axis=0, keepdims=True)],
            axis=0)                                        # (2, TL) partials

    # VMEM budget: double-buffered input blocks + output slab + margin.
    vmem_need = 2 * (BN * C * TL * itemsize + BN * TL * 4 + 2 * TL * 4)
    vmem_limit = int(min(max(vmem_need + (2 << 20), 32 << 20), 48 << 20))

    cost = pl.CostEstimate(
        flops=3 * N * C * HW,
        transcendentals=N * HW,
        bytes_accessed=(x.size * itemsize + t.size * 4
                        + grid_n * num_tiles * 2 * TL * 4),
    )

    # NOTE: blocks are kept large by the BN/TL budget above, so the extra
    # pipeline depth (pl.Buffered) for the tiny-block regime is not needed.
    parts = pl.pallas_call(
        kernel,
        out_shape=jax.ShapeDtypeStruct((grid_n, num_tiles, 2, TL), jnp.float32),
        grid_spec=pltpu.PrefetchScalarGridSpec(
            num_scalar_prefetch=0,
            grid=(grid_n, num_tiles),
            in_specs=[
                pl.BlockSpec((BN, C, TL), lambda n, i: (n, 0, i)),
                pl.BlockSpec((BN, 1, TL), lambda n, i: (n, 0, i)),
            ],
            out_specs=pl.BlockSpec((None, None, 2, TL),
                                   lambda n, i: (n, i, 0, 0)),
        ),
        compiler_params=pltpu.CompilerParams(
            dimension_semantics=("parallel", "parallel"),
            vmem_limit_bytes=vmem_limit),
        cost_estimate=cost,
    )(x, t)

    # size_average=True with weight=None -> mean over non-ignored pixels.
    # (All pixels ignored -> 0/0 -> NaN, matching PyTorch. The f32 lane
    # partials are exact up to ~2^24 contributions/lane -- far beyond any
    # realistic image.)
    return jnp.sum(parts[:, :, 0, :]) / jnp.sum(parts[:, :, 1, :])


def _reference(inputs, targets):
    N, C, H, W = inputs.shape
    x = jnp.transpose(inputs, (0, 2, 3, 1)).reshape(-1, C).astype(jnp.float32)
    t = targets.reshape(-1)
    valid = t != IGNORE_INDEX
    safe_t = jnp.where(valid, t, 0)
    picked = jnp.take_along_axis(jnp.log(x), safe_t[:, None], axis=1)[:, 0]
    loss = jnp.where(valid, -picked, 0.0)
    return jnp.sum(loss) / jnp.sum(valid.astype(jnp.float32))


if __name__ == "__main__":
    key = jax.random.PRNGKey(0)
    k1, k2, k3 = jax.random.split(key, 3)

    N, C, H, W = 2, 4, 16, 16
    # The module takes log of its inputs -> feed probabilities (softmax).
    logits = jax.random.normal(k1, (N, C, H, W), dtype=jnp.float32)
    inputs = jax.nn.softmax(logits, axis=1)

    targets = jax.random.randint(k2, (N, H, W), 0, C, dtype=jnp.int32)
    # Sprinkle in some ignore_index pixels.
    ignore_mask = jax.random.bernoulli(k3, 0.1, (N, H, W))
    targets = jnp.where(ignore_mask, IGNORE_INDEX, targets)

    loss = cross_entropy_loss_2d(inputs, targets)
    jax.block_until_ready(loss)

    ref = _reference(inputs, targets)
    assert jnp.allclose(loss, ref, rtol=1e-5, atol=1e-5), (loss, ref)
    print("KERNEL_OK")
</pallas_src>

<mosaic_0001>
module attributes {stable_mosaic.version = 11 : i64} {
  func.func @kernel(%arg0: i32, %arg1: i32, %arg2: memref<2x4x256xf32, #tpu.memory_space<vmem>>, %arg3: memref<2x1x256xi32, #tpu.memory_space<vmem>>, %arg4: memref<1x1x2x256xf32, #tpu.memory_space<vmem>>) attributes {dimension_semantics = [#tpu.dimension_semantics<parallel>, #tpu.dimension_semantics<parallel>], iteration_bounds = array<i64: 1, 1>, scalar_prefetch = 0 : i64, scratch_operands = 0 : i64, tpu.core_type = #tpu.core_type<tc>, window_params = [{transform_indices = @transform_0, window_bounds = array<i64: 2, 4, 256>}, {transform_indices = @transform_1, window_bounds = array<i64: 2, 1, 256>}, {transform_indices = @transform_2, window_bounds = array<i64: 1, 1, 2, 256>}]} {
    %c0 = arith.constant 0 : index
    %c0_0 = arith.constant 0 : index
    %c0_1 = arith.constant 0 : index
    %0 = vector.load %arg2[%c0, %c0_0, %c0_1] : memref<2x4x256xf32, #tpu.memory_space<vmem>>, vector<2x4x256xf32>
    %c0_2 = arith.constant 0 : index
    %c0_3 = arith.constant 0 : index
    %c0_4 = arith.constant 0 : index
    %1 = vector.load %arg3[%c0_2, %c0_3, %c0_4] : memref<2x1x256xi32, #tpu.memory_space<vmem>>, vector<2x1x256xi32>
    %2 = tpu.iota {dimensions = array<i32: 1>} : vector<2x4x256xi32>
    %3 = vector.broadcast %1 : vector<2x1x256xi32> to vector<2x4x256xi32>
    %4 = arith.cmpi eq, %2, %3 : vector<2x4x256xi32>
    %cst = arith.constant 0.000000e+00 : f32
    %5 = vector.broadcast %cst : f32 to vector<2x4x256xf32>
    %6 = arith.select %4, %0, %5 : vector<2x4x256xi1>, vector<2x4x256xf32>
    %cst_5 = arith.constant dense<0.000000e+00> : vector<2x256xf32>
    %7 = vector.multi_reduction <add>, %6, %cst_5 [1] : vector<2x4x256xf32> to vector<2x256xf32>
    %8 = math.log %7 : vector<2x256xf32>
    %9 = vector.shape_cast %1 : vector<2x1x256xi32> to vector<2x256xi32>
    %c256_i32 = arith.constant 256 : i32
    %10 = arith.muli %arg1, %c256_i32 : i32
    %11 = tpu.iota {dimensions = array<i32: 1>} : vector<2x256xi32>
    %12 = vector.broadcast %10 : i32 to vector<2x256xi32>
    %13 = arith.addi %12, %11 : vector<2x256xi32>
    %c2_i32 = arith.constant 2 : i32
    %14 = arith.muli %arg0, %c2_i32 : i32
    %15 = tpu.iota {dimensions = array<i32: 0>} : vector<2x256xi32>
    %16 = vector.broadcast %14 : i32 to vector<2x256xi32>
    %17 = arith.addi %16, %15 : vector<2x256xi32>
    %c255_i32 = arith.constant 255 : i32
    %18 = vector.broadcast %c255_i32 : i32 to vector<2x256xi32>
    %19 = arith.cmpi ne, %9, %18 : vector<2x256xi32>
    %c256_i32_6 = arith.constant 256 : i32
    %20 = vector.broadcast %c256_i32_6 : i32 to vector<2x256xi32>
    %21 = arith.cmpi slt, %13, %20 : vector<2x256xi32>
    %22 = arith.andi %19, %21 : vector<2x256xi1>
    %c2_i32_7 = arith.constant 2 : i32
    %23 = vector.broadcast %c2_i32_7 : i32 to vector<2x256xi32>
    %24 = arith.cmpi slt, %17, %23 : vector<2x256xi32>
    %25 = arith.andi %22, %24 : vector<2x256xi1>
    %cst_8 = arith.constant 0.000000e+00 : f32
    %26 = vector.broadcast %cst_8 : f32 to vector<2x256xf32>
    %27 = arith.subf %26, %8 : vector<2x256xf32>
    %cst_9 = arith.constant 0.000000e+00 : f32
    %28 = vector.broadcast %cst_9 : f32 to vector<2x256xf32>
    %29 = arith.select %25, %27, %28 : vector<2x256xi1>, vector<2x256xf32>
    %cst_10 = arith.constant dense<0.000000e+00> : vector<256xf32>
    %30 = vector.multi_reduction <add>, %29, %cst_10 [0] : vector<2x256xf32> to vector<256xf32>
    %31 = vector.shape_cast %30 : vector<256xf32> to vector<1x256xf32>
    %32 = arith.extui %25 : vector<2x256xi1> to vector<2x256xi32>
    %33 = arith.sitofp %32 : vector<2x256xi32> to vector<2x256xf32>
    %cst_11 = arith.constant dense<0.000000e+00> : vector<256xf32>
    %34 = vector.multi_reduction <add>, %33, %cst_11 [0] : vector<2x256xf32> to vector<256xf32>
    %35 = vector.shape_cast %34 : vector<256xf32> to vector<1x256xf32>
    %36 = tpu.concatenate %31, %35 in 0 : vector<1x256xf32>, vector<1x256xf32> -> vector<2x256xf32>
    %c0_12 = arith.constant 0 : index
    %c0_13 = arith.constant 0 : index
    %c0_14 = arith.constant 0 : index
    %c0_15 = arith.constant 0 : index
    %37 = vector.load %arg4[%c0_12, %c0_13, %c0_14, %c0_15] : memref<1x1x2x256xf32, #tpu.memory_space<vmem>>, vector<1x1x2x256xf32>
    %38 = vector.shape_cast %37 : vector<1x1x2x256xf32> to vector<2x256xf32>
    %39 = vector.shape_cast %36 : vector<2x256xf32> to vector<1x1x2x256xf32>
    tpu.vector_store %arg4[%c0_12, %c0_13, %c0_14, %c0_15], %39 {strides = array<i32>} : memref<1x1x2x256xf32, #tpu.memory_space<vmem>>, vector<1x1x2x256xf32>,
    return
  }
  func.func @transform_0(%arg0: i32, %arg1: i32) -> (i32, i32, i32) {
    %c0_i32 = arith.constant 0 : i32
    %c0_i32_0 = arith.constant 0 : i32
    return %arg0, %c0_i32, %arg1 : i32, i32, i32
  }
  func.func @transform_1(%arg0: i32, %arg1: i32) -> (i32, i32, i32) {
    %c0_i32 = arith.constant 0 : i32
    %c0_i32_0 = arith.constant 0 : i32
    return %arg0, %c0_i32, %arg1 : i32, i32, i32
  }
  func.func @transform_2(%arg0: i32, %arg1: i32) -> (i32, i32, i32, i32) {
    %c0_i32 = arith.constant 0 : i32
    %c0_i32_0 = arith.constant 0 : i32
    %c0_i32_1 = arith.constant 0 : i32
    return %arg0, %arg1, %c0_i32, %c0_i32_0 : i32, i32, i32, i32
  }
}

</mosaic_0001>

<llo_original>
// kernel: tpu_custom_call.1
$region0: #{tpu_custom_call.1}
  #allocation0 [shape = 'u32[]', space=smem, size = 0x4, offset = 0x4, fixed_abs, tag = 'smem constant byte address 0x4 - core index']
  #allocation1 [shape = 'u32[144,128]{1,0:T(1,128)}', space=vmem, size = 0x12000, scoped, tag = 'internal scratch']
  %s0 = inlined_call_operand.hbm [shape: f32[2,4,256], index: 0, kind: input, shape index: {}]
  %s1 = inlined_call_operand.hbm [shape: s32[2,1,256], index: 1, kind: input, shape index: {}]
  %s2 = inlined_call_operand.hbm [shape: f32[1,1,2,256], index: 2, kind: output, shape index: {}]
  %s3 = sld [smem:[#allocation0]]
  $region26: #{tpu_custom_call.1} parent=0
    _
  %s5 = ssub.s32 1, %s3
  %s6 = scalar_select 0, %s5, %s3
  $region1: #{tpu_custom_call.1} parent=0
    #allocation2 [shape = 'u8[8192]{0}', space=vmem, size = 0x2000, scoped, tag = 'input window, operand 0, single buffered']
    #allocation3 [shape = 's32[1]{0}', space=sflag, size = 0x4, scoped, tag = 'scoped memory for tpu_custom_call.1']
    #allocation4 [shape = 's32[1]{0}', space=sflag, size = 0x4, scoped, tag = 'scoped memory for tpu_custom_call.1']
    #allocation5 [shape = 'u8[2048]{0}', space=vmem, size = 0x800, scoped, tag = 'input window, operand 1, single buffered']
    #allocation6 [shape = 's32[1]{0}', space=sflag, size = 0x4, scoped, tag = 'scoped memory for tpu_custom_call.1']
    #allocation7 [shape = 'u8[2048]{0}', space=vmem, size = 0x800, scoped, tag = 'output window, operand 0, single buffered']
    %7 = vsyncpa [#allocation3], 0
    %8 = vsyncpa [#allocation6], 0
    %9 = vsyncpa [#allocation4], 0
    // Predicated region
    $region2: #{tpu_custom_call.1} parent=1 // pred_check
      _
    $region3: #{tpu_custom_call.1} parent=1 // pred_check_branch
      %11 = sbr.rel (0) target = $region5
    $region4: #{tpu_custom_call.1} parent=1 // pred_region
      %s13 = ssub.s32 256, 256
      %14 = vsyncadd [#allocation3], %s13
      %s15 = sshll.u32 [#allocation2], 4
      %s16 = int_to_ptr.vmem [resolvable:$true] %s15
      %21 = dma.hbm_to_vmem [thread:$0]  %s0, 256, %s16, [#allocation3], 128, 128, 8
    $region5: #{tpu_custom_call.1} parent=1 // pred_fallthru
      _
    // Predicated region
    $region6: #{tpu_custom_call.1} parent=1 // pred_check
      _
    $region7: #{tpu_custom_call.1} parent=1 // pred_check_branch
      %23 = sbr.rel (0) target = $region9
    $region8: #{tpu_custom_call.1} parent=1 // pred_region
      %s25 = ssub.s32 64, 64
      %26 = vsyncadd [#allocation6], %s25
      %s27 = sshll.u32 [#allocation5], 4
      %s28 = int_to_ptr.vmem [resolvable:$true] %s27
      %33 = dma.hbm_to_vmem [thread:$0]  %s1, 64, %s28, [#allocation6], 32, 32, 2
    $region9: #{tpu_custom_call.1} parent=1 // pred_fallthru
      _
    // Predicated region
    $region10: #{tpu_custom_call.1} parent=1 // pred_check
      _
    $region11: #{tpu_custom_call.1} parent=1 // pred_check_branch
      %35 = sbr.rel (0) target = $region13
    $region12: #{tpu_custom_call.1} parent=1 // pred_region
      %36 = dma.done [#allocation3], 256
    $region13: #{tpu_custom_call.1} parent=1 // pred_fallthru
      _
    // Predicated region
    $region14: #{tpu_custom_call.1} parent=1 // pred_check
      _
    $region15: #{tpu_custom_call.1} parent=1 // pred_check_branch
      %38 = sbr.rel (0) target = $region17
    $region16: #{tpu_custom_call.1} parent=1 // pred_region
      %39 = dma.done [#allocation6], 64
    $region17: #{tpu_custom_call.1} parent=1 // pred_fallthru
      _
    %v40 = vld [vmem:[#allocation2] sm:$0xff]
    %v41 = vld [vmem:[#allocation2 + $0x8] sm:$0xff]
    %v42 = vld [vmem:[#allocation5] sm:$0x3]
    %v43 = vld [vmem:[#allocation5 + $0x2] sm:$0x3]
    %v44 = vlaneseq
    %v45 = vshrl.u32 %v44, 7
    %v46 = vlaneseq
    %v47 = vshrl.u32 %v46, 7
    %v48 = vsub.s32 0, %v47
    %v49 = vrot.slane %v42, %v48
    %v50 = vlaneseq
    %v51 = vshrl.u32 %v50, 7
    %v52 = vsub.s32 1, %v51
    %v53 = vrot.slane %v42, %v52
    %v54 = vlaneseq
    %v55 = vshrl.u32 %v54, 7
    %v56 = vsub.s32 0, %v55
    %v57 = vrot.slane %v43, %v56
    %v58 = vlaneseq
    %v59 = vshrl.u32 %v58, 7
    %v60 = vsub.s32 1, %v59
    %v61 = vrot.slane %v43, %v60
    %vm62 = vcmp.eq.s32.totalorder %v45, %v49
    %vm63 = vcmp.eq.s32.totalorder %v45, %v53
    %vm64 = vcmp.eq.s32.totalorder %v45, %v57
    %vm65 = vcmp.eq.s32.totalorder %v45, %v61
    %v68 = vcombine.high %v40, %v40
    %v69 = vcombine.high %v41, %v41
    %v72 = vsel %vm62, %v40, 0.0
    %v73 = vsel %vm63, %v68, 0.0
    %v74 = vsel %vm64, %v41, 0.0
    %v75 = vsel %vm65, %v69, 0.0
    %vm76 = vcmask 1043456
    %v77 = vsel %vm76, %v72, 0.0
    %v78 = vrot.slane %v77, 4
    %v79 = vadd.f32 %v77, %v78
    %v80 = vrot.slane %v79, 2
    %v81 = vadd.f32 %v79, %v80
    %v82 = vrot.slane %v81, 1
    %v83 = vadd.f32 %v81, %v82
    %v84 = vsel %vm76, %v73, 0.0
    %v85 = vrot.slane %v84, 4
    %v86 = vadd.f32 %v84, %v85
    %v87 = vrot.slane %v86, 2
    %v88 = vadd.f32 %v86, %v87
    %v89 = vrot.slane %v88, 1
    %v90 = vadd.f32 %v88, %v89
    %v91 = vsel %vm76, %v74, 0.0
    %v92 = vrot.slane %v91, 4
    %v93 = vadd.f32 %v91, %v92
    %v94 = vrot.slane %v93, 2
    %v95 = vadd.f32 %v93, %v94
    %v96 = vrot.slane %v95, 1
    %v97 = vadd.f32 %v95, %v96
    %v98 = vsel %vm76, %v75, 0.0
    %v99 = vrot.slane %v98, 4
    %v100 = vadd.f32 %v98, %v99
    %v101 = vrot.slane %v100, 2
    %v102 = vadd.f32 %v100, %v101
    %v103 = vrot.slane %v102, 1
    %v104 = vadd.f32 %v102, %v103
    %v105 = vlog2.pop %v83
    %v106 = vmul.f32 %v105, 0.6931472
    %v107 = vlog2.pop %v90
    %v108 = vmul.f32 %v107, 0.6931472
    %v109 = vlog2.pop %v97
    %v110 = vmul.f32 %v109, 0.6931472
    %v111 = vlog2.pop %v104
    %v112 = vmul.f32 %v111, 0.6931472
    %s113 = smul.u32 0, 256
    %v114 = vlaneseq
    %v115 = vand.u32 %v114, 127
    %v116 = vadd.s32 %v115, 128
    %v117 = vstv %s113
    %v118 = vadd.s32 %v117, %v115
    %v119 = vadd.s32 %v117, %v116
    %s120 = smul.u32 0, 2
    %v121 = vstv %s120
    %v122 = vadd.s32 %v121, %v45
    %vm123 = vcmp.ne.s32.totalorder %v42, 255
    %vm124 = vcmp.ne.s32.totalorder %v43, 255
    %vm125 = vcmp.lt.s32.totalorder %v118, 256
    %vm126 = vcmp.lt.s32.totalorder %v119, 256
    %v127 = vsel %vm125, 1, 0
    %v128 = vsel %vm126, 1, 0
    %v129 = vcombine.low %v127, %v128
    %v131 = vunpack.c.l.s4 1966171168
    %v132 = vunpack.c.0.s8 %v131
    %v133 = vlaneseq
    %v134 = vshrl.u32 %v133, 7
    %v135 = vsub.s32 %v132, %v134
    %v136 = vrot.slane %v129, %v135
    %v137 = vcombine.high %v136, %v136
    %v139 = vunpack.c.l.s4 1966171168
    %v140 = vunpack.c.0.s8 %v139
    %v141 = vlaneseq
    %v142 = vshrl.u32 %v141, 7
    %v143 = vsub.s32 %v140, %v142
    %v144 = vrot.slane %v136, %v143
    %v146 = vunpack.c.l.s4 1966171168
    %v147 = vunpack.c.0.s8 %v146
    %v148 = vlaneseq
    %v149 = vshrl.u32 %v148, 7
    %v150 = vsub.s32 %v147, %v149
    %v151 = vrot.slane %v137, %v150
    %vm152 = vcmp.ne.s32.totalorder %v144, 0
    %vm153 = vcmp.ne.s32.totalorder %v151, 0
    %vm154 = vmand %vm123, %vm152
    %vm155 = vmand %vm124, %vm153
    %vm156 = vcmp.lt.s32.totalorder %v122, 2
    %v157 = vsel %vm156, 1, 0
    %v158 = vlaneseq
    %v159 = vshrl.u32 %v158, 7
    %v160 = vsub.s32 0, %v159
    %v161 = vrot.slane %v157, %v160
    %v162 = vlaneseq
    %v163 = vshrl.u32 %v162, 7
    %v164 = vsub.s32 1, %v163
    %v165 = vrot.slane %v157, %v164
    %vm166 = vcmp.ne.s32.totalorder %v161, 0
    %vm167 = vcmp.ne.s32.totalorder %v165, 0
    %vm168 = vmand %vm154, %vm166
    %vm169 = vmand %vm155, %vm167
    %v170 = vsub.f32 0.0, %v106
    %v171 = vsub.f32 0.0, %v108
    %v172 = vsub.f32 0.0, %v110
    %v173 = vsub.f32 0.0, %v112
    %v178 = vcombine.low %v170, %v171
    %v180 = vunpack.c.l.s4 1966171168
    %v181 = vunpack.c.0.s8 %v180
    %v182 = vlaneseq
    %v183 = vshrl.u32 %v182, 7
    %v184 = vsub.s32 %v181, %v183
    %v185 = vrot.slane %v178, %v184
    %v187 = vunpack.c.l.s4 1966171168
    %v188 = vunpack.c.0.s8 %v187
    %v189 = vlaneseq
    %v190 = vshrl.u32 %v189, 7
    %v191 = vsub.s32 %v188, %v190
    %v192 = vrot.slane %v185, %v191
    %v193 = vcombine.low %v172, %v173
    %v195 = vunpack.c.l.s4 1966171168
    %v196 = vunpack.c.0.s8 %v195
    %v197 = vlaneseq
    %v198 = vshrl.u32 %v197, 7
    %v199 = vsub.s32 %v196, %v198
    %v200 = vrot.slane %v193, %v199
    %v202 = vunpack.c.l.s4 1966171168
    %v203 = vunpack.c.0.s8 %v202
    %v204 = vlaneseq
    %v205 = vshrl.u32 %v204, 7
    %v206 = vsub.s32 %v203, %v205
    %v207 = vrot.slane %v200, %v206
    %v210 = vsel %vm168, %v192, 0.0
    %v211 = vsel %vm169, %v207, 0.0
    %v214 = vcombine.low %v210, %v211
    %v216 = vunpack.c.l.s4 1966171168
    %v217 = vunpack.c.0.s8 %v216
    %v218 = vlaneseq
    %v219 = vshrl.u32 %v218, 7
    %v220 = vsub.s32 %v217, %v219
    %v221 = vrot.slane %v214, %v220
    %v222 = vcombine.high %v221, %v221
    %v224 = vunpack.c.l.s4 1966171168
    %v225 = vunpack.c.0.s8 %v224
    %v226 = vlaneseq
    %v227 = vshrl.u32 %v226, 7
    %v228 = vsub.s32 %v225, %v227
    %v229 = vrot.slane %v221, %v228
    %v231 = vunpack.c.l.s4 1966171168
    %v232 = vunpack.c.0.s8 %v231
    %v233 = vlaneseq
    %v234 = vshrl.u32 %v233, 7
    %v235 = vsub.s32 %v232, %v234
    %v236 = vrot.slane %v222, %v235
    %vm239 = vcmask 1041408
    %v240 = vsel %vm239, %v229, 0.0
    %v241 = vrot.slane %v240, 4
    %v242 = vadd.f32 %v240, %v241
    %v243 = vrot.slane %v242, 2
    %v244 = vadd.f32 %v242, %v243
    %v245 = vrot.slane %v244, 1
    %v246 = vadd.f32 %v244, %v245
    %v247 = vsel %vm239, %v236, 0.0
    %v248 = vrot.slane %v247, 4
    %v249 = vadd.f32 %v247, %v248
    %v250 = vrot.slane %v249, 2
    %v251 = vadd.f32 %v249, %v250
    %v252 = vrot.slane %v251, 1
    %v253 = vadd.f32 %v251, %v252
    %v254 = vsel %vm168, 1, 0
    %v255 = vsel %vm169, 1, 0
    %v256 = vcvt.s32.f32 %v254
    %v257 = vcvt.s32.f32 %v255
    %v260 = vcombine.low %v256, %v257
    %v262 = vunpack.c.l.s4 1966171168
    %v263 = vunpack.c.0.s8 %v262
    %v264 = vlaneseq
    %v265 = vshrl.u32 %v264, 7
    %v266 = vsub.s32 %v263, %v265
    %v267 = vrot.slane %v260, %v266
    %v268 = vcombine.high %v267, %v267
    %v270 = vunpack.c.l.s4 1966171168
    %v271 = vunpack.c.0.s8 %v270
    %v272 = vlaneseq
    %v273 = vshrl.u32 %v272, 7
    %v274 = vsub.s32 %v271, %v273
    %v275 = vrot.slane %v267, %v274
    %v277 = vunpack.c.l.s4 1966171168
    %v278 = vunpack.c.0.s8 %v277
    %v279 = vlaneseq
    %v280 = vshrl.u32 %v279, 7
    %v281 = vsub.s32 %v278, %v280
    %v282 = vrot.slane %v268, %v281
    %v285 = vsel %vm239, %v275, 0.0
    %v286 = vrot.slane %v285, 4
    %v287 = vadd.f32 %v285, %v286
    %v288 = vrot.slane %v287, 2
    %v289 = vadd.f32 %v287, %v288
    %v290 = vrot.slane %v289, 1
    %v291 = vadd.f32 %v289, %v290
    %v292 = vsel %vm239, %v282, 0.0
    %v293 = vrot.slane %v292, 4
    %v294 = vadd.f32 %v292, %v293
    %v295 = vrot.slane %v294, 2
    %v296 = vadd.f32 %v294, %v295
    %v297 = vrot.slane %v296, 1
    %v298 = vadd.f32 %v296, %v297
    %v301 = vrot.slane %v291, 7
    %v302 = vrot.slane %v298, 7
    %vm305 = vcmask 1040384
    %v306 = vsel %vm305, %v246, %v301
    %v307 = vsel %vm305, %v253, %v302
    %v310 = vcombine.low %v306, %v307
    %v312 = vunpack.c.l.s4 1983009808
    %v313 = vunpack.c.0.s8 %v312
    %v314 = vlaneseq
    %v315 = vshrl.u32 %v314, 7
    %v316 = vsub.s32 %v313, %v315
    %v317 = vrot.slane %v310, %v316
    %319 = vst [vmem:[#allocation7] sm:$0xf] %v317
    // Predicated region
    $region18: #{tpu_custom_call.1} parent=1 // pred_check
      _
    $region19: #{tpu_custom_call.1} parent=1 // pred_check_branch
      %321 = sbr.rel (0) target = $region21
    $region20: #{tpu_custom_call.1} parent=1 // pred_region
      %s323 = ssub.s32 64, 64
      %324 = vsyncadd [#allocation4], %s323
      %s326 = sshll.u32 [#allocation7], 4
      %s327 = int_to_ptr.vmem [resolvable:$true] %s326
      %329 = dma.vmem_to_hbm [thread:$0]  %s327, 64, %s2, [#allocation4]
    $region21: #{tpu_custom_call.1} parent=1 // pred_fallthru
      _
    // Predicated region
    $region22: #{tpu_custom_call.1} parent=1 // pred_check
      _
    $region23: #{tpu_custom_call.1} parent=1 // pred_check_branch
      %331 = sbr.rel (0) target = $region25
    $region24: #{tpu_custom_call.1} parent=1 // pred_region
      %332 = dma.done [#allocation4], 64
    $region25: #{tpu_custom_call.1} parent=1 // pred_fallthru
      _
    %333 = vsyncpa [#allocation3], 1
    %334 = vsyncpa [#allocation6], 1
    %335 = vsyncpa [#allocation4], 1

</llo_original>
